<compile_context>
chip_gen: v5e
topology: v5e:2x2
jax: 0.10.0
libtpu: 0.0.40
codegen_flags: <defaults>
</compile_context>

<pallas_src>
import math

import jax
import jax.numpy as jnp
from jax.experimental import pallas as pl
from jax.experimental.pallas import tpu as pltpu


def _layer_scale_kernel(x_ref, g_ref, o_ref):
    # (row_block, cols) * (1, cols) broadcast multiply on the VPU, in the
    # promoted compute dtype (g_ref carries it), cast back to the output dtype.
    x = x_ref[...]
    g = g_ref[...]
    o_ref[...] = (x.astype(g.dtype) * g).astype(o_ref.dtype)


def _vmem_capacity_bytes():
    """Chip VMEM capacity; conservative (v7x per-TC) fallback if unqueryable."""
    try:
        return int(pltpu.get_tpu_info().vmem_capacity_bytes)
    except Exception:
        return 64 * 1024 * 1024


def _pick_row_block(rows, cols, itemsize, budget_bytes):
    """Fixed, sublane-aligned row block for a cdiv grid.

    * multiple of the dtype's sublane pack (8 f32, 16 bf16, 32 int8/fp8) so
      every vector store is unmasked and vregs are fully packed,
    * one block stays under `budget_bytes` (input + output blocks are each
      double-buffered by the Pallas pipeline -> ~4x this per kernel),
    * if the whole slab fits in one block, use the full extent (always legal,
      and avoids pointless grid steps on single-TC chips)."""
    pack = max(8, 32 // max(1, itemsize))
    fit = budget_bytes // max(1, cols * itemsize)
    max_rows = max(pack, (fit // pack) * pack)
    if rows <= max_rows:
        return rows
    return max_rows


def layer_scale(x, gamma, *, inplace=False):
    """x: (..., dim) activations, gamma: (dim,) per-channel scale. Returns x * gamma."""
    orig_shape = x.shape
    C = orig_shape[-1]
    assert gamma.shape == (C,), f"gamma must be ({C},), got {gamma.shape}"

    R = 1
    for s in orig_shape[:-1]:
        R *= s

    compute_dtype = jnp.promote_types(x.dtype, gamma.dtype)
    x2 = x.reshape(R, C)
    g2 = gamma.reshape(1, C).astype(compute_dtype)

    # Lane-dense repack: the channel axis is the fastest-varying axis, so a
    # row of length L = lcm(C, 128) holds L // C consecutive channel vectors.
    # Tiling gamma L // C times keeps the multiply exact while making the last
    # dim a multiple of 128 -> every vreg, vst and DMA is fully occupied.
    if C % 128 != 0:
        L = (C * 128) // math.gcd(C, 128)  # lcm(C, 128)
        if (R * C) % L == 0:
            reps = L // C
            x2 = x2.reshape((R * C) // L, L)
            g2 = jnp.tile(g2, (1, reps))

    rows, cols = x2.shape
    itemsize = x2.dtype.itemsize

    # Generation-aware per-block budget (capped at 4 MiB: ~85% of HBM roofline
    # is already reached there; bigger tiles just eat VMEM headroom on v7x).
    budget_bytes = min(4 * 1024 * 1024, _vmem_capacity_bytes() // 16)
    row_block = _pick_row_block(rows, cols, itemsize, budget_bytes)
    grid = (pl.cdiv(rows, row_block),)

    extra = {}
    if inplace:
        # Mirrors the module's `x.mul_(gamma)`: reuse x's buffer for the output
        # (halves HBM footprint; XLA inserts a copy if x is still live).
        extra["input_output_aliases"] = {0: 0}

    out2 = pl.pallas_call(
        _layer_scale_kernel,
        out_shape=jax.ShapeDtypeStruct((rows, cols), x.dtype),
        grid=grid,
        in_specs=[
            pl.BlockSpec((row_block, cols), lambda i: (i, 0)),  # activation block
            pl.BlockSpec((1, cols), lambda i: (0, 0)),          # gamma, resident every step
        ],
        out_specs=pl.BlockSpec((row_block, cols), lambda i: (i, 0)),
        compiler_params=pltpu.CompilerParams(
            dimension_semantics=("parallel",),
            vmem_limit_bytes=32 * 1024 * 1024,
        ),
        **extra,
    )(x2, g2)
    return out2.reshape(orig_shape)


def reference(x, gamma):
    """Pure-JAX mirror of the PyTorch forward: x * gamma, result in x.dtype."""
    return (x * gamma).astype(x.dtype)


if __name__ == "__main__":
    key = jax.random.PRNGKey(0)
    k_x1, k_g1, k_x2, k_g2, k_x3, k_g3, k_x4, k_g4 = jax.random.split(key, 8)

    # Case 1: ViT-style activations (B, N, C) with a narrow channel dim (32)
    # -> lane-dense repack to last dim lcm(32, 128) = 128.
    B, N, C = 2, 16, 32
    x1 = jax.random.normal(k_x1, (B, N, C), jnp.float32)
    gamma_init = 1e-5 * jnp.ones((C,), jnp.float32)          # module init: init_values * ones(dim)
    gamma_rand = jax.random.normal(k_g1, (C,), jnp.float32)  # "trained" per-channel scales
    for g in (gamma_init, gamma_rand):
        out = jax.block_until_ready(layer_scale(x1, g))
        ref = reference(x1, g)
        assert jnp.allclose(out, ref, atol=1e-6, rtol=1e-6), \
            f"case1 max abs err {float(jnp.max(jnp.abs(out - ref)))}"

    # Case 2: ViT-small width (384 = 3 * 128) -> natively lane-dense,
    # single full-extent block (no pointless split on single-TC chips).
    B2, N2, C2 = 2, 16, 384
    x2 = jax.random.normal(k_x2, (B2, N2, C2), jnp.float32)
    g2 = 1e-5 * (1.0 + 0.1 * jax.random.normal(k_g2, (C2,), jnp.float32))
    out2 = jax.block_until_ready(layer_scale(x2, g2))
    ref2 = reference(x2, g2)
    assert jnp.allclose(out2, ref2, atol=1e-6, rtol=1e-6), \
        f"case2 max abs err {float(jnp.max(jnp.abs(out2 - ref2)))}"

    # Case 3: larger activation -> multiple cdiv grid steps with a ragged last
    # block (exercises out-of-bounds write masking + "parallel" sharding).
    B3, N3, C3 = 4, 1024, 768
    x3 = jax.random.normal(k_x3, (B3, N3, C3), jnp.float32)
    g3 = 1e-5 * (1.0 + 0.1 * jax.random.normal(k_g3, (C3,), jnp.float32))
    out3 = jax.block_until_ready(layer_scale(x3, g3))
    ref3 = reference(x3, g3)
    assert jnp.allclose(out3, ref3, atol=1e-6, rtol=1e-6), \
        f"case3 max abs err {float(jnp.max(jnp.abs(out3 - ref3)))}"

    # Case 4: bf16 activations with f32 gamma and C = 192 (not a divisor of 128)
    # -> generalized lcm repack (L = 384) + 16-row sublane packing + f32 math.
    B4, N4, C4 = 2, 16, 192
    x4 = jax.random.normal(k_x4, (B4, N4, C4), jnp.float32).astype(jnp.bfloat16)
    g4 = jax.random.normal(k_g4, (C4,), jnp.float32)
    out4 = jax.block_until_ready(layer_scale(x4, g4))
    ref4 = (x4.astype(jnp.float32) * g4).astype(jnp.bfloat16)
    assert jnp.allclose(out4.astype(jnp.float32), ref4.astype(jnp.float32),
                        atol=1e-2, rtol=1e-2), "case4 mismatch"

    print("KERNEL_OK")
</pallas_src>

<mosaic_0001>
module attributes {stable_mosaic.version = 11 : i64} {
  func.func @_layer_scale_kernel(%arg0: i32, %arg1: memref<8x128xf32, #tpu.memory_space<vmem>>, %arg2: memref<1x128xf32, #tpu.memory_space<vmem>>, %arg3: memref<8x128xf32, #tpu.memory_space<vmem>>) attributes {dimension_semantics = [#tpu.dimension_semantics<parallel>], iteration_bounds = array<i64: 1>, scalar_prefetch = 0 : i64, scratch_operands = 0 : i64, tpu.core_type = #tpu.core_type<tc>, window_params = [{transform_indices = @transform_0, window_bounds = array<i64: 8, 128>}, {pipeline_mode = #tpu.pipeline_mode<synchronous>, transform_indices = @transform_1, window_bounds = array<i64: 1, 128>}, {transform_indices = @transform_2, window_bounds = array<i64: 8, 128>}]} {
    %c0 = arith.constant 0 : index
    %c0_0 = arith.constant 0 : index
    %0 = vector.load %arg1[%c0, %c0_0] : memref<8x128xf32, #tpu.memory_space<vmem>>, vector<8x128xf32>
    %c0_1 = arith.constant 0 : index
    %c0_2 = arith.constant 0 : index
    %1 = vector.load %arg2[%c0_1, %c0_2] : memref<1x128xf32, #tpu.memory_space<vmem>>, vector<1x128xf32>
    %2 = vector.broadcast %1 : vector<1x128xf32> to vector<8x128xf32>
    %3 = arith.mulf %0, %2 : vector<8x128xf32>
    %c0_3 = arith.constant 0 : index
    %c0_4 = arith.constant 0 : index
    %4 = vector.load %arg3[%c0_3, %c0_4] : memref<8x128xf32, #tpu.memory_space<vmem>>, vector<8x128xf32>
    tpu.vector_store %arg3[%c0_3, %c0_4], %3 {strides = array<i32>} : memref<8x128xf32, #tpu.memory_space<vmem>>, vector<8x128xf32>,
    return
  }
  func.func @transform_0(%arg0: i32) -> (i32, i32) {
    %c0_i32 = arith.constant 0 : i32
    %c0_i32_0 = arith.constant 0 : i32
    return %arg0, %c0_i32 : i32, i32
  }
  func.func @transform_1(%arg0: i32) -> (i32, i32) {
    %c0_i32 = arith.constant 0 : i32
    %c0_i32_0 = arith.constant 0 : i32
    %c0_i32_1 = arith.constant 0 : i32
    return %c0_i32, %c0_i32_0 : i32, i32
  }
  func.func @transform_2(%arg0: i32) -> (i32, i32) {
    %c0_i32 = arith.constant 0 : i32
    %c0_i32_0 = arith.constant 0 : i32
    return %arg0, %c0_i32 : i32, i32
  }
}

</mosaic_0001>

<llo_original>
// kernel: tpu_custom_call.1
$region0: #{tpu_custom_call.1}
  #allocation0 [shape = 'u32[]', space=smem, size = 0x4, offset = 0x4, fixed_abs, tag = 'smem constant byte address 0x4 - core index']
  #allocation1 [shape = 'u32[72,128]{1,0:T(1,128)}', space=vmem, size = 0x9000, scoped, tag = 'internal scratch']
  %s0 = inlined_call_operand.hbm [shape: f32[8,128], index: 0, kind: input, shape index: {}]
  %s1 = inlined_call_operand.hbm [shape: f32[1,128], index: 1, kind: input, shape index: {}]
  %s2 = inlined_call_operand.hbm [shape: f32[8,128], index: 2, kind: output, shape index: {}]
  %s3 = sld [smem:[#allocation0]]
  $region26: #{tpu_custom_call.1} parent=0
    _
  %s5 = ssub.s32 1, %s3
  %s6 = scalar_select 0, %s5, %s3
  $region1: #{tpu_custom_call.1} parent=0
    #allocation2 [shape = 'u8[4096]{0}', space=vmem, size = 0x1000, scoped, tag = 'input window, operand 0, single buffered']
    #allocation3 [shape = 's32[1]{0}', space=sflag, size = 0x4, scoped, tag = 'scoped memory for tpu_custom_call.1']
    #allocation4 [shape = 's32[1]{0}', space=sflag, size = 0x4, scoped, tag = 'scoped memory for tpu_custom_call.1']
    #allocation5 [shape = 'u8[512]{0}', space=vmem, size = 0x400, scoped, tag = 'input window, operand 1, single buffered']
    #allocation6 [shape = 's32[1]{0}', space=sflag, size = 0x4, scoped, tag = 'scoped memory for tpu_custom_call.1']
    #allocation7 [shape = 'u8[4096]{0}', space=vmem, size = 0x1000, scoped, tag = 'output window, operand 0, single buffered']
    %7 = vsyncpa [#allocation3], 0
    %8 = vsyncpa [#allocation6], 0
    %9 = vsyncpa [#allocation4], 0
    // Predicated region
    $region2: #{tpu_custom_call.1} parent=1 // pred_check
      _
    $region3: #{tpu_custom_call.1} parent=1 // pred_check_branch
      %11 = sbr.rel (0) target = $region5
    $region4: #{tpu_custom_call.1} parent=1 // pred_region
      %13 = vsyncadd [#allocation3], 0
      %s15 = sshll.u32 %s0, 4
      %s16 = int_to_ptr.hbm [resolvable:$true] %s15
      %s17 = sshll.u32 [#allocation2], 4
      %s18 = int_to_ptr.vmem [resolvable:$true] %s17
      %20 = dma.hbm_to_vmem [thread:$0]  %s16, 128, %s18, [#allocation3]
    $region5: #{tpu_custom_call.1} parent=1 // pred_fallthru
      _
    // Predicated region
    $region6: #{tpu_custom_call.1} parent=1 // pred_check
      _
    $region7: #{tpu_custom_call.1} parent=1 // pred_check_branch
      %22 = sbr.rel (0) target = $region9
    $region8: #{tpu_custom_call.1} parent=1 // pred_region
      %24 = vsyncadd [#allocation6], 0
      %s26 = sshll.u32 %s1, 4
      %s27 = int_to_ptr.hbm [resolvable:$true] %s26
      %s28 = sshll.u32 [#allocation5], 4
      %s29 = int_to_ptr.vmem [resolvable:$true] %s28
      %31 = dma.hbm_to_vmem [thread:$0]  %s27, 16, %s29, [#allocation6]
    $region9: #{tpu_custom_call.1} parent=1 // pred_fallthru
      _
    // Predicated region
    $region10: #{tpu_custom_call.1} parent=1 // pred_check
      _
    $region11: #{tpu_custom_call.1} parent=1 // pred_check_branch
      %33 = sbr.rel (0) target = $region13
    $region12: #{tpu_custom_call.1} parent=1 // pred_region
      %35 = dma.done [#allocation3], 128
    $region13: #{tpu_custom_call.1} parent=1 // pred_fallthru
      _
    // Predicated region
    $region14: #{tpu_custom_call.1} parent=1 // pred_check
      _
    $region15: #{tpu_custom_call.1} parent=1 // pred_check_branch
      %37 = sbr.rel (0) target = $region17
    $region16: #{tpu_custom_call.1} parent=1 // pred_region
      %39 = dma.done [#allocation6], 16
    $region17: #{tpu_custom_call.1} parent=1 // pred_fallthru
      _
    %v40 = vld [vmem:[#allocation2] sm:$0xff]
    %v41 = vld [vmem:[#allocation5] sm:$0x1]
    %v43 = vperm.slane %v41, 0
    %v45 = vmul.f32 %v40, %v43
    %46 = vst [vmem:[#allocation7] sm:$0xff] %v45
    // Predicated region
    $region18: #{tpu_custom_call.1} parent=1 // pred_check
      _
    $region19: #{tpu_custom_call.1} parent=1 // pred_check_branch
      %48 = sbr.rel (0) target = $region21
    $region20: #{tpu_custom_call.1} parent=1 // pred_region
      %50 = vsyncadd [#allocation4], 0
      %s52 = sshll.u32 [#allocation7], 4
      %s53 = int_to_ptr.vmem [resolvable:$true] %s52
      %s54 = sshll.u32 %s2, 4
      %s55 = int_to_ptr.hbm [resolvable:$true] %s54
      %57 = dma.vmem_to_hbm [thread:$0]  %s53, 128, %s55, [#allocation4]
    $region21: #{tpu_custom_call.1} parent=1 // pred_fallthru
      _
    // Predicated region
    $region22: #{tpu_custom_call.1} parent=1 // pred_check
      _
    $region23: #{tpu_custom_call.1} parent=1 // pred_check_branch
      %59 = sbr.rel (0) target = $region25
    $region24: #{tpu_custom_call.1} parent=1 // pred_region
      %61 = dma.done [#allocation4], 128
    $region25: #{tpu_custom_call.1} parent=1 // pred_fallthru
      _
    %62 = vsyncpa [#allocation3], 1
    %63 = vsyncpa [#allocation6], 1
    %64 = vsyncpa [#allocation4], 1

</llo_original>
